<compile_context>
chip_gen: v7x
topology: tpu7x:2x2x1
jax: 0.10.0
libtpu: 0.0.40
codegen_flags: <defaults>
</compile_context>

<pallas_src>
import functools
import math

import jax
import jax.numpy as jnp
from jax.experimental import pallas as pl
from jax.experimental.pallas import tpu as pltpu

STRENGTH = 0.4   # module default
_LANE = 128
_MAX_FOLD = 16   # cap on rows folded into the lane axis (bounds the select cost)


# ----------------------------------------------------------------------------- kernels
def _gdrop_kernel(x_ref, z_ref, o_ref, *, log1ps):
    # x_ref: (tr, th) in x.dtype; z_ref: (tr, 1) f32.
    # rnd = (1+strength)**z = exp(z * ln(1+strength))  -> EUP transcendental in f32.
    rnd = jnp.exp(z_ref[...] * jnp.float32(log1ps))
    # Cast rnd to x.dtype before the multiply (matches torch: rnd.type(x.dtype); x*rnd).
    o_ref[...] = x_ref[...] * rnd.astype(x_ref.dtype)


def _gdrop_fold_kernel(x_ref, z_ref, o_ref, *, log1ps, hw, k):
    # x_ref: (tr, k*hw); z_ref: (tr, k) f32 — k original (n,c) rows folded per slab row.
    rnd = jnp.exp(z_ref[...] * jnp.float32(log1ps))                     # (tr, k) f32
    lane = jax.lax.broadcasted_iota(jnp.int32, x_ref.shape, 1)          # lane index
    # Segment-broadcast: lanes [j*hw, (j+1)*hw) take rnd[:, j].  Ascending overwrite
    # needs only a lower-bound compare per segment (k-1 select pairs, pure VPU).
    rnd_full = pl.broadcast_to(rnd[:, 0:1], x_ref.shape)
    for j in range(1, k):
        rnd_full = jnp.where(lane >= j * hw, rnd[:, j:j + 1], rnd_full)
    o_ref[...] = x_ref[...] * rnd_full.astype(x_ref.dtype)


# ------------------------------------------------------------------------ tile sizing
def _sublane(itemsize):
    # Native packed sublane tile: 8 for f32, 16 for bf16/fp16, 32 for int8/fp8.
    return {4: 8, 2: 16, 1: 32}.get(itemsize, 8)


def _vmem_budget():
    """(target tile bytes, scoped VMEM limit) per generation."""
    try:
        cap = pltpu.get_tpu_info().vmem_capacity_bytes
    except Exception:
        cap = 64 << 20                      # conservative (v7x-sized) fallback
    if cap >= (96 << 20):                   # v5e / v6e: 128 MiB physical VMEM
        return 8 << 20, 48 << 20
    return 4 << 20, 32 << 20                # v7x: 64 MiB physical VMEM


def _fold_factor(rows, hw):
    """Fold k consecutive (n,c) rows into the lane axis so the folded width is a
    multiple of 128 (lane-dense stores).  Only for small hw not already 128-aligned."""
    if hw % _LANE == 0 or hw >= 512 or rows <= 1:
        return 1
    base = _LANE // math.gcd(hw, _LANE)
    if base > _MAX_FOLD or rows % base != 0:
        # TODO(synk): odd spatial sizes like 7x7 (=49) can't be folded cheaply; they
        # fall back to full-hw blocks with masked partial stores.
        return 1
    k = base
    while k * hw < 512 and rows % (2 * k) == 0 and 2 * k <= _MAX_FOLD:
        k *= 2
    return k


def _choose_tiles(rows, hw, itemsize, *, target_bytes, allow_hw_split=True, min_steps=8):
    """Pick (tile_rows, tile_hw): ~target-sized blocks, legal BlockSpec dims, and
    enough grid steps for software pipelining / v7x dual-TC sharding."""
    sub = _sublane(itemsize)
    lane_cap = max(_LANE, ((target_bytes // (sub * itemsize)) // _LANE) * _LANE)
    if hw <= lane_cap or not allow_hw_split:
        tile_hw = hw                                   # full last dim (always legal)
    else:
        tile_hw = lane_cap                             # multiple of 128; edge masked
    row_bytes = max(1, tile_hw * itemsize)
    tr = max(1, target_bytes // row_bytes)
    if rows <= sub:
        tile_rows = rows
    else:
        tile_rows = min(rows, max(sub, (tr // sub) * sub))

    def nsteps():
        return pl.cdiv(rows, tile_rows) * pl.cdiv(hw, tile_hw)

    while nsteps() < min_steps and tile_rows > sub:
        tile_rows = max(sub, ((tile_rows // 2) // sub) * sub)
    while (nsteps() < min_steps and allow_hw_split
           and tile_hw % _LANE == 0 and tile_hw > _LANE):
        tile_hw = max(_LANE, ((tile_hw // 2) // _LANE) * _LANE)
    return tile_rows, tile_hw


# --------------------------------------------------------------------------- wrapper
def g_drop_mul(x, z, *, strength=STRENGTH, donate_x=False):
    """x: (N, C, H, W); z: (N, C) standard-normal samples. Returns x * (1+strength)**z."""
    if strength == 0.0:
        return x                                   # deterministic / zero-strength path
    N, C, H, W = x.shape
    rows, hw = N * C, H * W
    itemsize = jnp.dtype(x.dtype).itemsize
    log1ps = math.log(1.0 + strength)
    target_bytes, vmem_limit = _vmem_budget()

    k = _fold_factor(rows, hw)
    if k > 1:
        rows_k, hw_k = rows // k, k * hw
        x2 = x.reshape(rows_k, hw_k)
        z2 = z.reshape(rows_k, k).astype(jnp.float32)
        tile_rows, tile_hw = _choose_tiles(rows_k, hw_k, itemsize,
                                           target_bytes=target_bytes,
                                           allow_hw_split=False)
        kernel = functools.partial(_gdrop_fold_kernel, log1ps=log1ps, hw=hw, k=k)
        z_block = (tile_rows, k)
    else:
        rows_k, hw_k = rows, hw
        x2 = x.reshape(rows_k, hw_k)
        z2 = z.reshape(rows_k, 1).astype(jnp.float32)
        tile_rows, tile_hw = _choose_tiles(rows_k, hw_k, itemsize,
                                           target_bytes=target_bytes)
        kernel = functools.partial(_gdrop_kernel, log1ps=log1ps)
        z_block = (tile_rows, 1)

    grid = (pl.cdiv(rows_k, tile_rows), pl.cdiv(hw_k, tile_hw))
    cost = pl.CostEstimate(flops=rows * hw,
                           transcendentals=rows,
                           bytes_accessed=2 * rows * hw * itemsize + rows * 4)

    out2 = pl.pallas_call(
        kernel,
        out_shape=jax.ShapeDtypeStruct((rows_k, hw_k), x.dtype),
        grid=grid,
        in_specs=[
            pl.BlockSpec((tile_rows, tile_hw), lambda i, j: (i, j)),
            pl.BlockSpec(z_block, lambda i, j: (i, 0)),
        ],
        out_specs=pl.BlockSpec((tile_rows, tile_hw), lambda i, j: (i, j)),
        compiler_params=pltpu.CompilerParams(
            dimension_semantics=("parallel", "parallel"),
            vmem_limit_bytes=vmem_limit),
        cost_estimate=cost,
        input_output_aliases=({0: 0} if donate_x else {}),
    )(x2, z2)

    return out2.reshape(N, C, H, W)


def g_drop_layer_apply(x, key, *, strength=STRENGTH, deterministic=False):
    """Full forward of the module (mode='mul', axes=(0,1)): samples z with jax.random."""
    if deterministic or strength == 0.0:
        return x
    N, C = x.shape[0], x.shape[1]
    z = jax.random.normal(key, (N, C), dtype=jnp.float32)
    return g_drop_mul(x, z, strength=strength)


# -------------------------------------------------------------------------- reference
def _reference(x, z, strength):
    N, C = z.shape
    rnd = ((1.0 + strength) ** z.astype(jnp.float32)).reshape(N, C, 1, 1)
    return x * rnd.astype(x.dtype)        # cast-then-multiply, like the torch module


if __name__ == "__main__":
    key = jax.random.PRNGKey(0)
    kx, kz, kx2, kz2, kx3, kz3, ks = jax.random.split(key, 7)

    # Primary check: small NCHW input; axes=(0,1) -> one scalar per (n, c).
    N, C, H, W = 2, 4, 16, 16
    x = jax.random.normal(kx, (N, C, H, W), dtype=jnp.float32)
    z = jax.random.normal(kz, (N, C), dtype=jnp.float32)
    out = jax.block_until_ready(g_drop_mul(x, z, strength=STRENGTH))
    ref = _reference(x, z, STRENGTH)
    assert out.shape == x.shape and out.dtype == x.dtype
    assert jnp.allclose(out, ref, rtol=1e-5, atol=1e-5), "mismatch (base)"

    # Multi-tile 2-D grid path (rows and lanes both tiled).
    N2, C2 = 4, 8
    x_b = jax.random.normal(kx2, (N2, C2, H, W), dtype=jnp.float32)
    z_b = jax.random.normal(kz2, (N2, C2), dtype=jnp.float32)
    out_b = jax.block_until_ready(g_drop_mul(x_b, z_b, strength=STRENGTH))
    assert jnp.allclose(out_b, _reference(x_b, z_b, STRENGTH), rtol=1e-5, atol=1e-5), \
        "mismatch (2-D grid)"

    # Lane-folding path: H*W = 64 < 128 -> 8 rows folded into a 512-lane slab.
    x_c = jax.random.normal(kx3, (2, 8, 8, 8), dtype=jnp.float32)
    z_c = jax.random.normal(kz3, (2, 8), dtype=jnp.float32)
    out_c = jax.block_until_ready(g_drop_mul(x_c, z_c, strength=STRENGTH))
    assert jnp.allclose(out_c, _reference(x_c, z_c, STRENGTH), rtol=1e-5, atol=1e-5), \
        "mismatch (lane fold)"

    # bf16 path (rnd cast to x.dtype before the multiply, like the module).
    x_h = x.astype(jnp.bfloat16)
    out_h = jax.block_until_ready(g_drop_mul(x_h, z, strength=STRENGTH))
    ref_h = _reference(x_h, z, STRENGTH)
    assert out_h.dtype == jnp.bfloat16
    assert jnp.allclose(out_h.astype(jnp.float32), ref_h.astype(jnp.float32),
                        rtol=1e-2, atol=1e-2), "mismatch (bf16)"

    # Exercise the full forward helper (in-kernel only the multiply; RNG via jax.random).
    out_s = jax.block_until_ready(g_drop_layer_apply(x, ks, strength=STRENGTH))
    assert out_s.shape == x.shape

    print("KERNEL_OK")
</pallas_src>

<mosaic_0001>
module attributes {stable_mosaic.version = 11 : i64} {
  func.func @_gdrop_kernel(%arg0: i32, %arg1: i32, %arg2: memref<8x128xf32, #tpu.memory_space<vmem>>, %arg3: memref<8x1xf32, #tpu.memory_space<vmem>>, %arg4: memref<8x128xf32, #tpu.memory_space<vmem>>) attributes {dimension_semantics = [#tpu.dimension_semantics<parallel>, #tpu.dimension_semantics<parallel>], iteration_bounds = array<i64: 1, 2>, scalar_prefetch = 0 : i64, scratch_operands = 0 : i64, tpu.core_type = #tpu.core_type<tc>, window_params = [{transform_indices = @transform_0, window_bounds = array<i64: 8, 128>}, {transform_indices = @transform_1, window_bounds = array<i64: 8, 1>}, {transform_indices = @transform_2, window_bounds = array<i64: 8, 128>}]} {
    %c0 = arith.constant 0 : index
    %c0_0 = arith.constant 0 : index
    %0 = vector.load %arg3[%c0, %c0_0] : memref<8x1xf32, #tpu.memory_space<vmem>>, vector<8x1xf32>
    %cst = arith.constant 0.336472243 : f32
    %1 = vector.broadcast %cst : f32 to vector<8x1xf32>
    %2 = arith.mulf %0, %1 : vector<8x1xf32>
    %3 = math.exp %2 : vector<8x1xf32>
    %c0_1 = arith.constant 0 : index
    %c0_2 = arith.constant 0 : index
    %4 = vector.load %arg2[%c0_1, %c0_2] : memref<8x128xf32, #tpu.memory_space<vmem>>, vector<8x128xf32>
    %5 = vector.broadcast %3 : vector<8x1xf32> to vector<8x128xf32>
    %6 = arith.mulf %4, %5 : vector<8x128xf32>
    %c0_3 = arith.constant 0 : index
    %c0_4 = arith.constant 0 : index
    %7 = vector.load %arg4[%c0_3, %c0_4] : memref<8x128xf32, #tpu.memory_space<vmem>>, vector<8x128xf32>
    tpu.vector_store %arg4[%c0_3, %c0_4], %6 {strides = array<i32>} : memref<8x128xf32, #tpu.memory_space<vmem>>, vector<8x128xf32>,
    return
  }
  func.func @transform_0(%arg0: i32, %arg1: i32) -> (i32, i32) {
    %c0_i32 = arith.constant 0 : i32
    return %arg0, %arg1 : i32, i32
  }
  func.func @transform_1(%arg0: i32, %arg1: i32) -> (i32, i32) {
    %c0_i32 = arith.constant 0 : i32
    %c0_i32_0 = arith.constant 0 : i32
    return %arg0, %c0_i32 : i32, i32
  }
  func.func @transform_2(%arg0: i32, %arg1: i32) -> (i32, i32) {
    %c0_i32 = arith.constant 0 : i32
    return %arg0, %arg1 : i32, i32
  }
}

</mosaic_0001>

<llo_original>
// kernel: tpu_custom_call.1
$region0: #{tpu_custom_call.1}
  #allocation0 [shape = 'u32[]', space=smem, size = 0x4, offset = 0x4, fixed_abs, tag = 'smem constant byte address 0x4 - core index']
  #allocation1 [shape = 'u32[144,128]{1,0:T(1,128)}', space=vmem, size = 0x12000, scoped, tag = 'internal scratch']
  %s0 = inlined_call_operand.hbm [shape: f32[8,256], index: 0, kind: input, shape index: {}]
  %s1 = inlined_call_operand.vmem [shape: f32[8,1], index: 1, kind: input, shape index: {}]
  %s2 = inlined_call_operand.hbm [shape: f32[8,256], index: 2, kind: output, shape index: {}]
  %s3 = sld [smem:[#allocation0]]
  $region45: #{tpu_custom_call.1} parent=0
    _
  %s5 = ssub.s32 1, %s3
  %s6 = scalar_select 0, %s5, %s3
  $region1: #{tpu_custom_call.1} parent=0
    #allocation2 [shape = 'u8[8192]{0}', space=vmem, size = 0x2000, scoped, tag = 'input window, operand 0']
    #allocation3 [shape = 's32[2]{0}', space=sflag, size = 0x8, scoped, tag = 'scoped memory for tpu_custom_call.1']
    #allocation4 [shape = 's32[2]{0}', space=sflag, size = 0x8, scoped, tag = 'scoped memory for tpu_custom_call.1']
    #allocation5 [shape = 'u8[8192]{0}', space=vmem, size = 0x2000, scoped, tag = 'output window, operand 0']
    %7 = vsyncpa [#allocation3], 0
    %s8 = scalar_lea.sflag [#allocation3], 1
    %9 = vsyncpa %s8, 0
    %10 = vsyncpa [#allocation4], 0
    %s11 = scalar_lea.sflag [#allocation4], 1
    %12 = vsyncpa %s11, 0
    loop: start=0, step=1, limit=4
    $region2: #{tpu_custom_call.1} parent=1 // loop_pre_header
      _
    $region3: #{tpu_custom_call.1} parent=1 // loop_header
      %s14 = sphi 0, %s18
      %p15 = scmp.ge.s32.totalorder %s14, 4
      %s21 = sphi 0, %s33
      %s22 = sphi 0, %s29
      %s23 = sphi 0, %s21
      %s24 = sphi 0, %s22
      %s25 = sphi 0, %s23
      %s26 = sphi 0, %s24
      %s38 = sphi 0, %s40
      %s41 = sphi 0, %s38
      %s42 = sphi 0, %s41
      %s58 = sphi 0, %s42
      %s64 = sphi 0, %s66
      %s67 = sphi 0, %s64
      %s68 = sphi 0, %s67
      %s84 = sphi 0, %s68
      %s92 = sphi 0, %s94
      %s95 = sphi 0, %s92
      %s96 = sphi 0, %s95
      %s112 = sphi 0, %s96
    $region4: #{tpu_custom_call.1} parent=1 // loop_header_branch
      %17 = sbr.rel (%p15) target = $region8
    $region5: #{tpu_custom_call.1} parent=1 // loop_body
      %s19 = ssub.s32 %s14, 1
      %s20 = ssub.s32 %s14, 2
      %s27 = sadd.s32 1, %s22
      %p28 = scmp.ge.s32.totalorder %s27, 2
      %s29 = scalar_select %p28, 0, %s27
      %s30 = sadd.s32 1, %s21
      %s31 = scalar_select %p28, %s30, %s21
      %p32 = scmp.ge.s32.totalorder %s31, 1
      %s33 = scalar_select %p32, 0, %s31
      %s34 = ssub.s32 %s21, %s33
      %s35 = ssub.s32 %s22, %s29
      %s36 = sor.u32 %s34, %s35
      %p37 = scmp.eq.s32.totalorder %s36, 0
      %s39 = sadd.s32 %s38, 1
      %s40 = scalar_select %p37, %s38, %s39
      %p43 = pneg %p37
      %p44 = scmp.eq.s32.totalorder %s14, 1
      %p45 = por %p43, %p44
      %p46 = scmp.ne.s32.totalorder %s38, %s41
      %p47 = scmp.eq.s32.totalorder %s14, 0
      %p48 = por %p46, %p47
      %p49 = scmp.ne.s32.totalorder %s38, %s41
      %p50 = scmp.eq.s32.totalorder %s19, 1
      %p51 = por %p49, %p50
      %p52 = scmp.ne.s32.totalorder %s41, %s42
      %p53 = scmp.eq.s32.totalorder %s19, 0
      %p54 = por %p52, %p53
      %p55 = scmp.ne.s32.totalorder %s41, %s42
      %p56 = scmp.eq.s32.totalorder %s20, 1
      %p57 = por %p55, %p56
      %p59 = scmp.ne.s32.totalorder %s42, %s58
      %p60 = scmp.eq.s32.totalorder %s20, 0
      %p61 = por %p59, %p60
      %s62 = ssub.s32 %s21, %s33
      %p63 = scmp.eq.s32.totalorder %s62, 0
      %s65 = sadd.s32 %s64, 1
      %s66 = scalar_select %p63, %s64, %s65
      %p69 = pneg %p63
      %p70 = scmp.eq.s32.totalorder %s14, 1
      %p71 = por %p69, %p70
      %p72 = scmp.ne.s32.totalorder %s64, %s67
      %p73 = scmp.eq.s32.totalorder %s14, 0
      %p74 = por %p72, %p73
      %p75 = scmp.ne.s32.totalorder %s64, %s67
      %p76 = scmp.eq.s32.totalorder %s19, 1
      %p77 = por %p75, %p76
      %p78 = scmp.ne.s32.totalorder %s67, %s68
      %p79 = scmp.eq.s32.totalorder %s19, 0
      %p80 = por %p78, %p79
      %p81 = scmp.ne.s32.totalorder %s67, %s68
      %p82 = scmp.eq.s32.totalorder %s20, 1
      %p83 = por %p81, %p82
      %p85 = scmp.ne.s32.totalorder %s68, %s84
      %p86 = scmp.eq.s32.totalorder %s20, 0
      %p87 = por %p85, %p86
      %s88 = ssub.s32 %s21, %s33
      %s89 = ssub.s32 %s22, %s29
      %s90 = sor.u32 %s88, %s89
      %p91 = scmp.eq.s32.totalorder %s90, 0
      %s93 = sadd.s32 %s92, 1
      %s94 = scalar_select %p91, %s92, %s93
      %p97 = pneg %p91
      %p98 = scmp.eq.s32.totalorder %s14, 1
      %p99 = por %p97, %p98
      %p100 = scmp.ne.s32.totalorder %s92, %s95
      %p101 = scmp.eq.s32.totalorder %s14, 0
      %p102 = por %p100, %p101
      %p103 = scmp.ne.s32.totalorder %s92, %s95
      %p104 = scmp.eq.s32.totalorder %s19, 1
      %p105 = por %p103, %p104
      %p106 = scmp.ne.s32.totalorder %s95, %s96
      %p107 = scmp.eq.s32.totalorder %s19, 0
      %p108 = por %p106, %p107
      %p109 = scmp.ne.s32.totalorder %s95, %s96
      %p110 = scmp.eq.s32.totalorder %s20, 1
      %p111 = por %p109, %p110
      %p113 = scmp.ne.s32.totalorder %s96, %s112
      %p114 = scmp.eq.s32.totalorder %s20, 0
      %p115 = por %p113, %p114
      %p116 = scmp.le.s32.totalorder 1, %s14
      %p117 = scmp.lt.s32.totalorder %s14, 3
      %p118 = pnand %p116, %p117
      %p119 = pneg %p118
      // Predicated region
      $region9: #{tpu_custom_call.1} parent=5 // pred_check
        _
      $region10: #{tpu_custom_call.1} parent=5 // pred_check_branch
        %121 = sbr.rel (%p118) target = $region12
      $region11: #{tpu_custom_call.1} parent=5 // pred_region
        %s122 = ssub.s32 %s14, 1
        // Predicated region
        $region13: #{tpu_custom_call.1} parent=11 // pred_check
          %p123 = pneg %p80
        $region14: #{tpu_custom_call.1} parent=11 // pred_check_branch
          %125 = sbr.rel (%p123) target = $region16
        $region15: #{tpu_custom_call.1} parent=11 // pred_region
          %p126 = scmp.lt.s32.totalorder %s23, 0
          %s127 = scalar_select %p126, %s23, 0
          %s128 = smul.addr %s127, 8
          %s129 = scalar_lea.vmem %s1, %s128
        $region16: #{tpu_custom_call.1} parent=11 // pred_fallthru
          _
      $region12: #{tpu_custom_call.1} parent=5 // pred_fallthru
        _
      %p130 = scmp.lt.s32.totalorder %s14, 2
      // Predicated region
      $region17: #{tpu_custom_call.1} parent=5 // pred_check
        %p131 = pneg %p130
      $region18: #{tpu_custom_call.1} parent=5 // pred_check_branch
        %133 = sbr.rel (%p131) target = $region20
      $region19: #{tpu_custom_call.1} parent=5 // pred_region
        // Predicated region
        $region21: #{tpu_custom_call.1} parent=19 // pred_check
          %p134 = pneg %p48
        $region22: #{tpu_custom_call.1} parent=19 // pred_check_branch
          %136 = sbr.rel (%p134) target = $region24
        $region23: #{tpu_custom_call.1} parent=19 // pred_region
          %s137 = sand.u32 %s38, 1
          %s138 = scalar_lea.sflag [#allocation3], %s137
          %s139 = sand.u32 %s38, 1
          %s140 = smul.addr %s139, 8
          %s141 = scalar_lea.vmem [#allocation2], %s140
          %s143 = ssub.s32 128, 128
          %144 = vsyncadd %s138, %s143
          %s145 = smul.addr %s21, 2
          %s146 = sadd.s32 %s22, %s145
          %s147 = smul.addr %s146, 128
          %s148 = scalar_lea.hbm %s0, %s147
          %s150 = sshll.u32 %s141, 4
          %s151 = int_to_ptr.vmem [resolvable:$true] %s150
          %153 = dma.hbm_to_vmem [thread:$0]  %s148, 128, %s151, %s138
        $region24: #{tpu_custom_call.1} parent=19 // pred_fallthru
          _
      $region20: #{tpu_custom_call.1} parent=5 // pred_fallthru
        _
      %p154 = scmp.le.s32.totalorder 1, %s14
      %p155 = scmp.lt.s32.totalorder %s14, 3
      %p156 = pnand %p154, %p155
      %p157 = pneg %p156
      // Predicated region
      $region25: #{tpu_custom_call.1} parent=5 // pred_check
        _
      $region26: #{tpu_custom_call.1} parent=5 // pred_check_branch
        %159 = sbr.rel (%p156) target = $region28
      $region27: #{tpu_custom_call.1} parent=5 // pred_region
        %s160 = ssub.s32 %s14, 1
        %s161 = sand.u32 %s41, 1
        %s162 = scalar_lea.sflag [#allocation3], %s161
        %s163 = sand.u32 %s41, 1
        %s164 = smul.addr %s163, 8
        %s165 = scalar_lea.vmem [#allocation2], %s164
        // Predicated region
        $region29: #{tpu_custom_call.1} parent=27 // pred_check
          %p166 = pneg %p54
        $region30: #{tpu_custom_call.1} parent=27 // pred_check_branch
          %168 = sbr.rel (%p166) target = $region32
        $region31: #{tpu_custom_call.1} parent=27 // pred_region
          %169 = dma.done %s162, 128
        $region32: #{tpu_custom_call.1} parent=27 // pred_fallthru
          _
        %s170 = sand.u32 %s41, 1
        %s171 = scalar_lea.sflag [#allocation3], %s170
        %s172 = sand.u32 %s41, 1
        %s173 = smul.addr %s172, 8
        %s174 = scalar_lea.vmem [#allocation2], %s173
        %p175 = pneg %p54
        %p176 = pneg %p51
        %p177 = scmp.lt.s32.totalorder %s23, 0
        %s178 = scalar_select %p177, %s23, 0
        %s179 = smul.addr %s178, 8
        %s180 = scalar_lea.vmem %s1, %s179
        %p181 = pneg %p80
        %p182 = pneg %p77
        %p183 = pneg %p108
        %p184 = pneg %p105
        %s185 = sand.u32 %s95, 1
        %s186 = scalar_lea.sflag [#allocation4], %s185
        %s187 = sand.u32 %s95, 1
        %s188 = smul.addr %s187, 8
        %s189 = scalar_lea.vmem [#allocation5], %s188
        %p190 = scmp.lt.s32.totalorder %s23, 0
        %s191 = scalar_select %p190, %s23, 0
        %s192 = smul.addr %s191, 8
        %s193 = scalar_lea.vmem %s1, %s192
        %v194 = vld [vmem:[%s193] sm:$0xff]
        %v195 = vmul.f32 %v194, 0.33647224
        %v196 = vmul.f32 %v195, 1.442695
        %v197 = vpow.pop %v196
        %v198 = vld [vmem:[%s165] sm:$0xff]
        %200 = vset.pattern.permute.xlu0 0
        %201 = vperm.xlu0 %200, %v197
        %v202 = vpop.permute.xlu0 %201
        %v204 = vmul.f32 %v198, %v202
        %205 = vst [vmem:[%s189] sm:$0xff] %v204
        %s206 = sand.u32 %s95, 1
        %s207 = scalar_lea.sflag [#allocation4], %s206
        %s208 = sand.u32 %s95, 1
        %s209 = smul.addr %s208, 8
        %s210 = scalar_lea.vmem [#allocation5], %s209
        // Predicated region
        $region33: #{tpu_custom_call.1} parent=27 // pred_check
          %p211 = pneg %p105
        $region34: #{tpu_custom_call.1} parent=27 // pred_check_branch
          %213 = sbr.rel (%p211) target = $region36
        $region35: #{tpu_custom_call.1} parent=27 // pred_region
          %s215 = ssub.s32 128, 128
          %216 = vsyncadd %s207, %s215
          %s217 = smul.addr %s23, 2
          %s218 = sadd.s32 %s24, %s217
          %s219 = smul.addr %s218, 128
          %s220 = scalar_lea.hbm %s2, %s219
          %s222 = sshll.u32 %s210, 4
          %s223 = int_to_ptr.vmem [resolvable:$true] %s222
          %225 = dma.vmem_to_hbm [thread:$0]  %s223, 128, %s220, %s207
        $region36: #{tpu_custom_call.1} parent=27 // pred_fallthru
          _
      $region28: #{tpu_custom_call.1} parent=5 // pred_fallthru
        _
      %p226 = scmp.le.s32.totalorder 2, %s14
      // Predicated region
      $region37: #{tpu_custom_call.1} parent=5 // pred_check
        %p227 = pneg %p226
      $region38: #{tpu_custom_call.1} parent=5 // pred_check_branch
        %229 = sbr.rel (%p227) target = $region40
      $region39: #{tpu_custom_call.1} parent=5 // pred_region
        %s230 = ssub.s32 %s14, 2
        // Predicated region
        $region41: #{tpu_custom_call.1} parent=39 // pred_check
          %p231 = pneg %p111
        $region42: #{tpu_custom_call.1} parent=39 // pred_check_branch
          %233 = sbr.rel (%p231) target = $region44
        $region43: #{tpu_custom_call.1} parent=39 // pred_region
          %s234 = sand.u32 %s96, 1
          %s235 = scalar_lea.sflag [#allocation4], %s234
          %s236 = sand.u32 %s96, 1
          %s237 = smul.addr %s236, 8
          %s238 = scalar_lea.vmem [#allocation5], %s237
          %239 = dma.done %s235, 128
        $region44: #{tpu_custom_call.1} parent=39 // pred_fallthru
          _
      $region40: #{tpu_custom_call.1} parent=5 // pred_fallthru
        _
    $region6: #{tpu_custom_call.1} parent=1 // loop_footer
      %s18 = sadd.s32 1, %s14
    $region7: #{tpu_custom_call.1} parent=1 // loop_footer_branch
      %13 = sbr.rel target = $region3
    $region8: #{tpu_custom_call.1} parent=1 // loop_exit
      _
    %240 = vsyncpa [#allocation3], 1
    %s241 = scalar_lea.sflag [#allocation3], 1
    %242 = vsyncpa %s241, 1
    %243 = vsyncpa [#allocation4], 1
    %s244 = scalar_lea.sflag [#allocation4], 1
    %245 = vsyncpa %s244, 1

</llo_original>
